<compile_context>
chip_gen: v6e
topology: v6e:2x2x1
jax: 0.10.0
libtpu: 0.0.40
codegen_flags: <defaults>
</compile_context>

<pallas_src>
import jax
import jax.numpy as jnp
from jax.experimental import pallas as pl
from jax.experimental.pallas import tpu as pltpu


# ----------------------------------------------------------------------------
# Pass 1: conv matmul + per-channel sum / sum-of-squares accumulation.
# ----------------------------------------------------------------------------
def _conv_stats_kernel(p_ref, w_ref, conv_ref, sum_ref, sq_ref):
    # p_ref:    (TM, K_pad)      bf16 patches tile
    # w_ref:    (K_pad, C_pad)   bf16 weights (same block every iteration)
    # conv_ref: (TM, C_pad)      f32 conv output tile
    # sum_ref:  (1, C_pad)       f32 per-channel sum   (resident accumulator)
    # sq_ref:   (1, C_pad)       f32 per-channel sumsq (resident accumulator)
    i = pl.program_id(0)

    acc = jnp.dot(p_ref[...], w_ref[...],
                  preferred_element_type=jnp.float32)          # (TM, C_pad)
    conv_ref[...] = acc

    @pl.when(i == 0)
    def _():
        sum_ref[...] = jnp.zeros_like(sum_ref)
        sq_ref[...] = jnp.zeros_like(sq_ref)

    sum_ref[...] += jnp.sum(acc, axis=0, keepdims=True)         # (1, C_pad)
    sq_ref[...] += jnp.sum(acc * acc, axis=0, keepdims=True)    # (1, C_pad)


# ----------------------------------------------------------------------------
# Pass 2: affine batch-norm (precomputed scale/shift) + LeakyReLU(0.2).
# ----------------------------------------------------------------------------
def _bn_lrelu_kernel(conv_ref, scale_ref, shift_ref, out_ref):
    # conv_ref: (TM, C_pad) f32 ; scale/shift: (1, C_pad) f32
    y = conv_ref[...] * scale_ref[...] + shift_ref[...]
    # LeakyReLU(0.2): slope < 1  =>  max(y, 0.2*y)
    out_ref[...] = jnp.maximum(y, 0.2 * y).astype(out_ref.dtype)


# ----------------------------------------------------------------------------
# Wrapper glue
# ----------------------------------------------------------------------------
def _round_up(x, m):
    return (x + m - 1) // m * m


def _im2col(x, k, st):
    """x: (N, C, H, W) -> patches (N*Ho*Wo, C*k*k), ordered as (C, ki, kj)."""
    N, C, H, W = x.shape
    Ho = (H - k) // st + 1
    Wo = (W - k) // st + 1
    cols = []
    for ki in range(k):
        for kj in range(k):
            cols.append(x[:, :, ki:ki + st * Ho:st, kj:kj + st * Wo:st])
    patches = jnp.stack(cols, axis=2)                  # (N, C, k*k, Ho, Wo)
    patches = jnp.transpose(patches, (0, 3, 4, 1, 2))  # (N, Ho, Wo, C, k*k)
    return patches.reshape(N * Ho * Wo, C * k * k), Ho, Wo


def conv_block(x, weight, gamma, beta, st=2, *, eps=1e-5):
    """x: (N, in_ch, H, W) NCHW; weight: (out_ch, in_ch, 4, 4)."""
    N, Cin, H, W = x.shape
    Cout, _, k, _ = weight.shape

    patches, Ho, Wo = _im2col(x, k, st)                # (M, K) f32
    M, K = patches.shape

    # --- padding for lane density / MXU width ---
    K_pad = _round_up(K, 128)
    C_pad = _round_up(Cout, 128)

    # --- M tiling: multiple of 8, capped by a VMEM byte budget ---
    TM_MAX = 1024
    bytes_per_row = K_pad * 2 + 2 * C_pad * 4          # bf16 patch + f32 conv/out
    tm_budget = max(8, ((8 * 1024 * 1024) // bytes_per_row) // 8 * 8)
    TM = max(8, min(TM_MAX, tm_budget, _round_up(M, 8)))
    M_pad = _round_up(M, TM)
    grid_m = M_pad // TM

    # --- bf16 operands (f32 accumulation inside the kernel) ---
    patches_p = jnp.pad(patches.astype(jnp.bfloat16),
                        ((0, M_pad - M), (0, K_pad - K)))
    w_mat = weight.reshape(Cout, K).T.astype(jnp.bfloat16)      # (K, Cout)
    w_p = jnp.pad(w_mat, ((0, K_pad - K), (0, C_pad - Cout)))

    vmem_limit = 32 * 1024 * 1024

    # ----------------- pass 1: conv + batch statistics -----------------
    conv_out, csum, csq = pl.pallas_call(
        _conv_stats_kernel,
        out_shape=(
            jax.ShapeDtypeStruct((M_pad, C_pad), jnp.float32),
            jax.ShapeDtypeStruct((1, C_pad), jnp.float32),
            jax.ShapeDtypeStruct((1, C_pad), jnp.float32),
        ),
        grid_spec=pltpu.PrefetchScalarGridSpec(
            num_scalar_prefetch=0,
            grid=(grid_m,),
            in_specs=[
                pl.BlockSpec((TM, K_pad), lambda i: (i, 0)),
                pl.BlockSpec((K_pad, C_pad), lambda i: (0, 0)),
            ],
            out_specs=[
                pl.BlockSpec((TM, C_pad), lambda i: (i, 0)),
                pl.BlockSpec((1, C_pad), lambda i: (0, 0)),
                pl.BlockSpec((1, C_pad), lambda i: (0, 0)),
            ],
        ),
        compiler_params=pltpu.CompilerParams(
            dimension_semantics=("arbitrary",),   # stats accumulate across M
            vmem_limit_bytes=vmem_limit,
        ),
    )(patches_p, w_p)

    # --- BN affine parameters from the accumulated stats (tiny, plain JAX) ---
    mean = csum / jnp.float32(M)
    var = jnp.maximum(csq / jnp.float32(M) - mean * mean, 0.0)  # clamp >= 0
    inv_std = jax.lax.rsqrt(var + eps)
    gamma_p = jnp.pad(gamma.astype(jnp.float32).reshape(1, Cout),
                      ((0, 0), (0, C_pad - Cout)), constant_values=1.0)
    beta_p = jnp.pad(beta.astype(jnp.float32).reshape(1, Cout),
                     ((0, 0), (0, C_pad - Cout)))
    scale = gamma_p * inv_std
    shift = beta_p - mean * scale

    # ----------------- pass 2: normalize + LeakyReLU -----------------
    out_flat = pl.pallas_call(
        _bn_lrelu_kernel,
        out_shape=jax.ShapeDtypeStruct((M_pad, C_pad), x.dtype),
        grid_spec=pltpu.PrefetchScalarGridSpec(
            num_scalar_prefetch=0,
            grid=(grid_m,),
            in_specs=[
                pl.BlockSpec((TM, C_pad), lambda i: (i, 0)),
                pl.BlockSpec((1, C_pad), lambda i: (0, 0)),
                pl.BlockSpec((1, C_pad), lambda i: (0, 0)),
            ],
            out_specs=pl.BlockSpec((TM, C_pad), lambda i: (i, 0)),
        ),
        compiler_params=pltpu.CompilerParams(
            dimension_semantics=("parallel",),    # independent tiles
            vmem_limit_bytes=vmem_limit,
        ),
    )(conv_out, scale, shift)

    # (M, C_out) -> (N, Ho, Wo, C_out) -> NCHW
    out = out_flat[:M, :Cout].reshape(N, Ho, Wo, Cout)
    return jnp.transpose(out, (0, 3, 1, 2))


# ----------------------------------------------------------------------------
# Plain-JAX reference (f32) for a loose sanity check.
# ----------------------------------------------------------------------------
def _reference(x, weight, gamma, beta, st, eps=1e-5):
    conv = jax.lax.conv_general_dilated(
        x, weight, window_strides=(st, st), padding="VALID",
        dimension_numbers=("NCHW", "OIHW", "NCHW"))
    mean = jnp.mean(conv, axis=(0, 2, 3), keepdims=True)
    var = jnp.mean((conv - mean) ** 2, axis=(0, 2, 3), keepdims=True)
    y = (conv - mean) * jax.lax.rsqrt(var + eps)
    y = y * gamma.reshape(1, -1, 1, 1) + beta.reshape(1, -1, 1, 1)
    return jnp.where(y >= 0, y, 0.2 * y)


if __name__ == "__main__":
    key = jax.random.PRNGKey(0)
    k_x, k_w = jax.random.split(key)

    N, in_ch, H, W = 2, 4, 16, 16
    out_ch, st = 8, 2

    x = jax.random.normal(k_x, (N, in_ch, H, W), dtype=jnp.float32)
    # Conv2d weight shape: (out_ch, in_ch, 4, 4); deterministic init.
    weight = 0.1 * jax.random.normal(k_w, (out_ch, in_ch, 4, 4),
                                     dtype=jnp.float32)
    # BatchNorm2d init: gamma=1, beta=0.
    gamma = jnp.ones((out_ch,), dtype=jnp.float32)
    beta = jnp.zeros((out_ch,), dtype=jnp.float32)

    fwd = jax.jit(lambda xx, ww, gg, bb: conv_block(xx, ww, gg, bb, st=st))
    y = fwd(x, weight, gamma, beta)
    jax.block_until_ready(y)

    # output shape: (N, out_ch, (H-4)//st+1, (W-4)//st+1) = (2, 8, 7, 7)
    assert y.shape == (N, out_ch, (H - 4) // st + 1, (W - 4) // st + 1), y.shape

    # loose numeric check vs f32 reference (kernel matmul runs in bf16).
    y_ref = _reference(x, weight, gamma, beta, st)
    max_err = float(jnp.max(jnp.abs(y - y_ref)))
    assert max_err < 0.2, f"max abs error too large: {max_err}"

    print("KERNEL_OK")
</pallas_src>

<mosaic_0001>
module attributes {stable_mosaic.version = 11 : i64} {
  func.func @_conv_stats_kernel(%arg0: i32, %arg1: memref<104x128xbf16, #tpu.memory_space<vmem>>, %arg2: memref<128x128xbf16, #tpu.memory_space<vmem>>, %arg3: memref<104x128xf32, #tpu.memory_space<vmem>>, %arg4: memref<1x128xf32, #tpu.memory_space<vmem>>, %arg5: memref<1x128xf32, #tpu.memory_space<vmem>>) attributes {dimension_semantics = [#tpu.dimension_semantics<arbitrary>], iteration_bounds = array<i64: 1>, scalar_prefetch = 0 : i64, scratch_operands = 0 : i64, tpu.core_type = #tpu.core_type<tc>, window_params = [{transform_indices = @transform_0, window_bounds = array<i64: 104, 128>}, {pipeline_mode = #tpu.pipeline_mode<synchronous>, transform_indices = @transform_1, window_bounds = array<i64: 128, 128>}, {transform_indices = @transform_2, window_bounds = array<i64: 104, 128>}, {pipeline_mode = #tpu.pipeline_mode<synchronous>, transform_indices = @transform_3, window_bounds = array<i64: 1, 128>}, {pipeline_mode = #tpu.pipeline_mode<synchronous>, transform_indices = @transform_4, window_bounds = array<i64: 1, 128>}]} {
    %c0 = arith.constant 0 : index
    %c0_0 = arith.constant 0 : index
    %0 = vector.load %arg1[%c0, %c0_0] : memref<104x128xbf16, #tpu.memory_space<vmem>>, vector<104x128xbf16>
    %c0_1 = arith.constant 0 : index
    %c0_2 = arith.constant 0 : index
    %1 = vector.load %arg2[%c0_1, %c0_2] : memref<128x128xbf16, #tpu.memory_space<vmem>>, vector<128x128xbf16>
    %cst = arith.constant dense<0.000000e+00> : vector<104x128xf32>
    %2 = tpu.matmul %0, %1, %cst {dimension_numbers = #tpu.dot_dimension_numbers<[1], [0], [0], [1], [0, 0, 1, 1], [], []>} : vector<104x128xbf16>, vector<128x128xbf16>, vector<104x128xf32> -> vector<104x128xf32>
    %c0_3 = arith.constant 0 : index
    %c0_4 = arith.constant 0 : index
    %3 = vector.load %arg3[%c0_3, %c0_4] : memref<104x128xf32, #tpu.memory_space<vmem>>, vector<104x128xf32>
    tpu.vector_store %arg3[%c0_3, %c0_4], %2 {strides = array<i32>} : memref<104x128xf32, #tpu.memory_space<vmem>>, vector<104x128xf32>,
    %c0_i32 = arith.constant 0 : i32
    %4 = arith.cmpi eq, %arg0, %c0_i32 : i32
    %5 = arith.extui %4 : i1 to i32
    %c0_i32_5 = arith.constant 0 : i32
    %6 = arith.cmpi ne, %5, %c0_i32_5 : i32
    scf.if %6 {
      %cst_16 = arith.constant 0.000000e+00 : f32
      %18 = vector.broadcast %cst_16 : f32 to vector<1x128xf32>
      %c0_17 = arith.constant 0 : index
      %c0_18 = arith.constant 0 : index
      %19 = vector.load %arg4[%c0_17, %c0_18] : memref<1x128xf32, #tpu.memory_space<vmem>>, vector<1x128xf32>
      tpu.vector_store %arg4[%c0_17, %c0_18], %18 {strides = array<i32>} : memref<1x128xf32, #tpu.memory_space<vmem>>, vector<1x128xf32>,
      %cst_19 = arith.constant 0.000000e+00 : f32
      %20 = vector.broadcast %cst_19 : f32 to vector<1x128xf32>
      %c0_20 = arith.constant 0 : index
      %c0_21 = arith.constant 0 : index
      %21 = vector.load %arg5[%c0_20, %c0_21] : memref<1x128xf32, #tpu.memory_space<vmem>>, vector<1x128xf32>
      tpu.vector_store %arg5[%c0_20, %c0_21], %20 {strides = array<i32>} : memref<1x128xf32, #tpu.memory_space<vmem>>, vector<1x128xf32>,
    } else {
    }
    %c0_6 = arith.constant 0 : index
    %c0_7 = arith.constant 0 : index
    %7 = vector.load %arg4[%c0_6, %c0_7] : memref<1x128xf32, #tpu.memory_space<vmem>>, vector<1x128xf32>
    %cst_8 = arith.constant dense<0.000000e+00> : vector<128xf32>
    %8 = vector.multi_reduction <add>, %2, %cst_8 [0] : vector<104x128xf32> to vector<128xf32>
    %9 = vector.shape_cast %8 : vector<128xf32> to vector<1x128xf32>
    %10 = arith.addf %7, %9 : vector<1x128xf32>
    %c0_9 = arith.constant 0 : index
    %c0_10 = arith.constant 0 : index
    %11 = vector.load %arg4[%c0_9, %c0_10] : memref<1x128xf32, #tpu.memory_space<vmem>>, vector<1x128xf32>
    tpu.vector_store %arg4[%c0_9, %c0_10], %10 {strides = array<i32>} : memref<1x128xf32, #tpu.memory_space<vmem>>, vector<1x128xf32>,
    %c0_11 = arith.constant 0 : index
    %c0_12 = arith.constant 0 : index
    %12 = vector.load %arg5[%c0_11, %c0_12] : memref<1x128xf32, #tpu.memory_space<vmem>>, vector<1x128xf32>
    %13 = arith.mulf %2, %2 : vector<104x128xf32>
    %cst_13 = arith.constant dense<0.000000e+00> : vector<128xf32>
    %14 = vector.multi_reduction <add>, %13, %cst_13 [0] : vector<104x128xf32> to vector<128xf32>
    %15 = vector.shape_cast %14 : vector<128xf32> to vector<1x128xf32>
    %16 = arith.addf %12, %15 : vector<1x128xf32>
    %c0_14 = arith.constant 0 : index
    %c0_15 = arith.constant 0 : index
    %17 = vector.load %arg5[%c0_14, %c0_15] : memref<1x128xf32, #tpu.memory_space<vmem>>, vector<1x128xf32>
    tpu.vector_store %arg5[%c0_14, %c0_15], %16 {strides = array<i32>} : memref<1x128xf32, #tpu.memory_space<vmem>>, vector<1x128xf32>,
    return
  }
  func.func @transform_0(%arg0: i32) -> (i32, i32) {
    %c0_i32 = arith.constant 0 : i32
    %c0_i32_0 = arith.constant 0 : i32
    return %arg0, %c0_i32 : i32, i32
  }
  func.func @transform_1(%arg0: i32) -> (i32, i32) {
    %c0_i32 = arith.constant 0 : i32
    %c0_i32_0 = arith.constant 0 : i32
    %c0_i32_1 = arith.constant 0 : i32
    return %c0_i32, %c0_i32_0 : i32, i32
  }
  func.func @transform_2(%arg0: i32) -> (i32, i32) {
    %c0_i32 = arith.constant 0 : i32
    %c0_i32_0 = arith.constant 0 : i32
    return %arg0, %c0_i32 : i32, i32
  }
  func.func @transform_3(%arg0: i32) -> (i32, i32) {
    %c0_i32 = arith.constant 0 : i32
    %c0_i32_0 = arith.constant 0 : i32
    %c0_i32_1 = arith.constant 0 : i32
    return %c0_i32, %c0_i32_0 : i32, i32
  }
  func.func @transform_4(%arg0: i32) -> (i32, i32) {
    %c0_i32 = arith.constant 0 : i32
    %c0_i32_0 = arith.constant 0 : i32
    %c0_i32_1 = arith.constant 0 : i32
    return %c0_i32, %c0_i32_0 : i32, i32
  }
}

module attributes {stable_mosaic.version = 11 : i64} {
  func.func @_bn_lrelu_kernel(%arg0: i32, %arg1: memref<104x128xf32, #tpu.memory_space<vmem>>, %arg2: memref<1x128xf32, #tpu.memory_space<vmem>>, %arg3: memref<1x128xf32, #tpu.memory_space<vmem>>, %arg4: memref<104x128xf32, #tpu.memory_space<vmem>>) attributes {dimension_semantics = [#tpu.dimension_semantics<parallel>], iteration_bounds = array<i64: 1>, scalar_prefetch = 0 : i64, scratch_operands = 0 : i64, tpu.core_type = #tpu.core_type<tc>, window_params = [{transform_indices = @transform_0, window_bounds = array<i64: 104, 128>}, {pipeline_mode = #tpu.pipeline_mode<synchronous>, transform_indices = @transform_1, window_bounds = array<i64: 1, 128>}, {pipeline_mode = #tpu.pipeline_mode<synchronous>, transform_indices = @transform_2, window_bounds = array<i64: 1, 128>}, {transform_indices = @transform_3, window_bounds = array<i64: 104, 128>}]} {
    %c0 = arith.constant 0 : index
    %c0_0 = arith.constant 0 : index
    %0 = vector.load %arg1[%c0, %c0_0] : memref<104x128xf32, #tpu.memory_space<vmem>>, vector<104x128xf32>
    %c0_1 = arith.constant 0 : index
    %c0_2 = arith.constant 0 : index
    %1 = vector.load %arg2[%c0_1, %c0_2] : memref<1x128xf32, #tpu.memory_space<vmem>>, vector<1x128xf32>
    %2 = vector.broadcast %1 : vector<1x128xf32> to vector<104x128xf32>
    %3 = arith.mulf %0, %2 : vector<104x128xf32>
    %c0_3 = arith.constant 0 : index
    %c0_4 = arith.constant 0 : index
    %4 = vector.load %arg3[%c0_3, %c0_4] : memref<1x128xf32, #tpu.memory_space<vmem>>, vector<1x128xf32>
    %5 = vector.broadcast %4 : vector<1x128xf32> to vector<104x128xf32>
    %6 = arith.addf %3, %5 : vector<104x128xf32>
    %cst = arith.constant 2.000000e-01 : f32
    %7 = vector.broadcast %cst : f32 to vector<104x128xf32>
    %8 = arith.mulf %7, %6 : vector<104x128xf32>
    %9 = arith.maximumf %6, %8 : vector<104x128xf32>
    %c0_5 = arith.constant 0 : index
    %c0_6 = arith.constant 0 : index
    %10 = vector.load %arg4[%c0_5, %c0_6] : memref<104x128xf32, #tpu.memory_space<vmem>>, vector<104x128xf32>
    tpu.vector_store %arg4[%c0_5, %c0_6], %9 {strides = array<i32>} : memref<104x128xf32, #tpu.memory_space<vmem>>, vector<104x128xf32>,
    return
  }
  func.func @transform_0(%arg0: i32) -> (i32, i32) {
    %c0_i32 = arith.constant 0 : i32
    %c0_i32_0 = arith.constant 0 : i32
    return %arg0, %c0_i32 : i32, i32
  }
  func.func @transform_1(%arg0: i32) -> (i32, i32) {
    %c0_i32 = arith.constant 0 : i32
    %c0_i32_0 = arith.constant 0 : i32
    %c0_i32_1 = arith.constant 0 : i32
    return %c0_i32, %c0_i32_0 : i32, i32
  }
  func.func @transform_2(%arg0: i32) -> (i32, i32) {
    %c0_i32 = arith.constant 0 : i32
    %c0_i32_0 = arith.constant 0 : i32
    %c0_i32_1 = arith.constant 0 : i32
    return %c0_i32, %c0_i32_0 : i32, i32
  }
  func.func @transform_3(%arg0: i32) -> (i32, i32) {
    %c0_i32 = arith.constant 0 : i32
    %c0_i32_0 = arith.constant 0 : i32
    return %arg0, %c0_i32 : i32, i32
  }
}

</mosaic_0001>

<llo_original>
// kernel: _lambda_.3
$region0: #{_lambda_.3}
  #allocation0 [shape = 'u32[]', space=smem, size = 0x4, offset = 0x4, fixed_abs, tag = 'smem constant byte address 0x4 - core index']
  #allocation1 [shape = 'u32[144,128]{1,0:T(1,128)}', space=vmem, size = 0x12000, scoped, tag = 'internal scratch']
  %s0 = inlined_call_operand.vmem [shape: f32[104,128], index: 0, kind: input, shape index: {}]
  %s1 = inlined_call_operand.vmem [shape: f32[1,128], index: 1, kind: input, shape index: {}]
  %s2 = inlined_call_operand.vmem [shape: f32[1,128], index: 2, kind: input, shape index: {}]
  %s3 = inlined_call_operand.vmem [shape: f32[104,128], index: 3, kind: output, shape index: {}]
  %s4 = sld [smem:[#allocation0]]
  $region22: #{_lambda_.3} parent=0
    _
  %s6 = ssub.s32 1, %s4
  %s7 = scalar_select 0, %s6, %s4
  // Predicated region
  $region2: #{_lambda_.3} parent=0 // pred_check
    _
  $region3: #{_lambda_.3} parent=0 // pred_check_branch
    %9 = sbr.rel (0) target = $region5
  $region4: #{_lambda_.3} parent=0 // pred_region
    _
  $region5: #{_lambda_.3} parent=0 // pred_fallthru
    _
  // Predicated region
  $region6: #{_lambda_.3} parent=0 // pred_check
    _
  $region7: #{_lambda_.3} parent=0 // pred_check_branch
    %11 = sbr.rel (0) target = $region9
  $region8: #{_lambda_.3} parent=0 // pred_region
    _
  $region9: #{_lambda_.3} parent=0 // pred_fallthru
    _
  // Predicated region
  $region10: #{_lambda_.3} parent=0 // pred_check
    _
  $region11: #{_lambda_.3} parent=0 // pred_check_branch
    %13 = sbr.rel (0) target = $region13
  $region12: #{_lambda_.3} parent=0 // pred_region
    _
  $region13: #{_lambda_.3} parent=0 // pred_fallthru
    _
  %v14 = vld [vmem:[%s0] sm:$0xff]
  %v15 = vld [vmem:[%s0 + $0x8] sm:$0xff]
  %v16 = vld [vmem:[%s0 + $0x10] sm:$0xff]
  %v17 = vld [vmem:[%s0 + $0x18] sm:$0xff]
  %v18 = vld [vmem:[%s0 + $0x20] sm:$0xff]
  %v19 = vld [vmem:[%s0 + $0x28] sm:$0xff]
  %v20 = vld [vmem:[%s0 + $0x30] sm:$0xff]
  %v21 = vld [vmem:[%s0 + $0x38] sm:$0xff]
  %v22 = vld [vmem:[%s0 + $0x40] sm:$0xff]
  %v23 = vld [vmem:[%s0 + $0x48] sm:$0xff]
  %v24 = vld [vmem:[%s0 + $0x50] sm:$0xff]
  %v25 = vld [vmem:[%s0 + $0x58] sm:$0xff]
  %v26 = vld [vmem:[%s0 + $0x60] sm:$0xff]
  %v27 = vld [vmem:[%s1] sm:$0x1]
  %v29 = vlaneseq
  %v30 = vshrl.u32 %v29, 7
  %v31 = vsub.s32 0, %v30
  %v32 = vrot.slane %v27, %v31
  %v34 = vmul.f32 %v14, %v32
  %v35 = vmul.f32 %v15, %v32
  %v36 = vmul.f32 %v16, %v32
  %v37 = vmul.f32 %v17, %v32
  %v38 = vmul.f32 %v18, %v32
  %v39 = vmul.f32 %v19, %v32
  %v40 = vmul.f32 %v20, %v32
  %v41 = vmul.f32 %v21, %v32
  %v42 = vmul.f32 %v22, %v32
  %v43 = vmul.f32 %v23, %v32
  %v44 = vmul.f32 %v24, %v32
  %v45 = vmul.f32 %v25, %v32
  %v46 = vmul.f32 %v26, %v32
  %v47 = vld [vmem:[%s2] sm:$0x1]
  %v49 = vlaneseq
  %v50 = vshrl.u32 %v49, 7
  %v51 = vsub.s32 0, %v50
  %v52 = vrot.slane %v47, %v51
  %v54 = vadd.f32 %v34, %v52
  %v55 = vadd.f32 %v35, %v52
  %v56 = vadd.f32 %v36, %v52
  %v57 = vadd.f32 %v37, %v52
  %v58 = vadd.f32 %v38, %v52
  %v59 = vadd.f32 %v39, %v52
  %v60 = vadd.f32 %v40, %v52
  %v61 = vadd.f32 %v41, %v52
  %v62 = vadd.f32 %v42, %v52
  %v63 = vadd.f32 %v43, %v52
  %v64 = vadd.f32 %v44, %v52
  %v65 = vadd.f32 %v45, %v52
  %v66 = vadd.f32 %v46, %v52
  %v67 = vmul.f32 %v54, 0.2
  %v68 = vmul.f32 %v55, 0.2
  %v69 = vmul.f32 %v56, 0.2
  %v70 = vmul.f32 %v57, 0.2
  %v71 = vmul.f32 %v58, 0.2
  %v72 = vmul.f32 %v59, 0.2
  %v73 = vmul.f32 %v60, 0.2
  %v74 = vmul.f32 %v61, 0.2
  %v75 = vmul.f32 %v62, 0.2
  %v76 = vmul.f32 %v63, 0.2
  %v77 = vmul.f32 %v64, 0.2
  %v78 = vmul.f32 %v65, 0.2
  %v79 = vmul.f32 %v66, 0.2
  %v80 = vmax.f32 %v54, %v67
  %v81 = vmax.f32 %v55, %v68
  %v82 = vmax.f32 %v56, %v69
  %v83 = vmax.f32 %v57, %v70
  %v84 = vmax.f32 %v58, %v71
  %v85 = vmax.f32 %v59, %v72
  %v86 = vmax.f32 %v60, %v73
  %v87 = vmax.f32 %v61, %v74
  %v88 = vmax.f32 %v62, %v75
  %v89 = vmax.f32 %v63, %v76
  %v90 = vmax.f32 %v64, %v77
  %v91 = vmax.f32 %v65, %v78
  %v92 = vmax.f32 %v66, %v79
  %93 = vst [vmem:[%s3] sm:$0xff] %v80
  %94 = vst [vmem:[%s3 + $0x8] sm:$0xff] %v81
  %95 = vst [vmem:[%s3 + $0x10] sm:$0xff] %v82
  %96 = vst [vmem:[%s3 + $0x18] sm:$0xff] %v83
  %97 = vst [vmem:[%s3 + $0x20] sm:$0xff] %v84
  %98 = vst [vmem:[%s3 + $0x28] sm:$0xff] %v85
  %99 = vst [vmem:[%s3 + $0x30] sm:$0xff] %v86
  %100 = vst [vmem:[%s3 + $0x38] sm:$0xff] %v87
  %101 = vst [vmem:[%s3 + $0x40] sm:$0xff] %v88
  %102 = vst [vmem:[%s3 + $0x48] sm:$0xff] %v89
  %103 = vst [vmem:[%s3 + $0x50] sm:$0xff] %v90
  %104 = vst [vmem:[%s3 + $0x58] sm:$0xff] %v91
  %105 = vst [vmem:[%s3 + $0x60] sm:$0xff] %v92
  // Predicated region
  $region14: #{_lambda_.3} parent=0 // pred_check
    _
  $region15: #{_lambda_.3} parent=0 // pred_check_branch
    %107 = sbr.rel (0) target = $region17
  $region16: #{_lambda_.3} parent=0 // pred_region
    _
  $region17: #{_lambda_.3} parent=0 // pred_fallthru
    _
  // Predicated region
  $region18: #{_lambda_.3} parent=0 // pred_check
    _
  $region19: #{_lambda_.3} parent=0 // pred_check_branch
    %109 = sbr.rel (0) target = $region21
  $region20: #{_lambda_.3} parent=0 // pred_region
    _
  $region21: #{_lambda_.3} parent=0 // pred_fallthru
    _

// kernel: _lambda_.2
$region0: #{_lambda_.2}
  #allocation0 [shape = 'u32[]', space=smem, size = 0x4, offset = 0x4, fixed_abs, tag = 'smem constant byte address 0x4 - core index']
  #allocation1 [shape = 'u32[144,128]{1,0:T(1,128)}', space=vmem, size = 0x12000, scoped, tag = 'internal scratch']
  %s0 = inlined_call_operand.vmem [shape: bf16[104,128], index: 0, kind: input, shape index: {}]
  %s1 = inlined_call_operand.vmem [shape: bf16[128,128], index: 1, kind: input, shape index: {}]
  %s2 = inlined_call_operand.vmem [shape: f32[104,128], index: 2, kind: output, shape index: {0}]
  %s3 = inlined_call_operand.vmem [shape: f32[1,128], index: 3, kind: output, shape index: {1}]
  %s4 = inlined_call_operand.vmem [shape: f32[1,128], index: 4, kind: output, shape index: {2}]
  %5 = xla_tuple %s2, %s3, %s4
  %s6 = sld [smem:[#allocation0]]
  $region38: #{_lambda_.2} parent=0
    _
  %s8 = ssub.s32 1, %s6
  %s9 = scalar_select 0, %s8, %s6
  // Predicated region
  $region2: #{_lambda_.2} parent=0 // pred_check
    _
  $region3: #{_lambda_.2} parent=0 // pred_check_branch
    %11 = sbr.rel (0) target = $region5
  $region4: #{_lambda_.2} parent=0 // pred_region
    _
  $region5: #{_lambda_.2} parent=0 // pred_fallthru
    _
  // Predicated region
  $region6: #{_lambda_.2} parent=0 // pred_check
    _
  $region7: #{_lambda_.2} parent=0 // pred_check_branch
    %13 = sbr.rel (0) target = $region9
  $region8: #{_lambda_.2} parent=0 // pred_region
    _
  $region9: #{_lambda_.2} parent=0 // pred_fallthru
    _
  %v15 = vld [vmem:[%s0] sm:$0xf]
  %v16 = vld [vmem:[%s0 + $0x4] sm:$0xf]
  %v17 = vld [vmem:[%s0 + $0x8] sm:$0xf]
  %v18 = vld [vmem:[%s0 + $0xc] sm:$0xf]
  %v19 = vld [vmem:[%s0 + $0x10] sm:$0xf]
  %v20 = vld [vmem:[%s0 + $0x14] sm:$0xf]
  %v21 = vld [vmem:[%s0 + $0x18] sm:$0xf]
  %v22 = vld [vmem:[%s0 + $0x1c] sm:$0xf]
  %v23 = vld [vmem:[%s0 + $0x20] sm:$0xf]
  %v24 = vld [vmem:[%s0 + $0x24] sm:$0xf]
  %v25 = vld [vmem:[%s0 + $0x28] sm:$0xf]
  %v26 = vld [vmem:[%s0 + $0x2c] sm:$0xf]
  %v27 = vld [vmem:[%s0 + $0x30] sm:$0xf]
  %v28 = vld [vmem:[%s1] sm:$0xf]
  %v29 = vld [vmem:[%s1 + $0x4] sm:$0xf]
  %v30 = vld [vmem:[%s1 + $0x8] sm:$0xf]
  %v31 = vld [vmem:[%s1 + $0xc] sm:$0xf]
  %v32 = vld [vmem:[%s1 + $0x10] sm:$0xf]
  %v33 = vld [vmem:[%s1 + $0x14] sm:$0xf]
  %v34 = vld [vmem:[%s1 + $0x18] sm:$0xf]
  %v35 = vld [vmem:[%s1 + $0x1c] sm:$0xf]
  %v36 = vld [vmem:[%s1 + $0x20] sm:$0xf]
  %v37 = vld [vmem:[%s1 + $0x24] sm:$0xf]
  %v38 = vld [vmem:[%s1 + $0x28] sm:$0xf]
  %v39 = vld [vmem:[%s1 + $0x2c] sm:$0xf]
  %v40 = vld [vmem:[%s1 + $0x30] sm:$0xf]
  %v41 = vld [vmem:[%s1 + $0x34] sm:$0xf]
  %v42 = vld [vmem:[%s1 + $0x38] sm:$0xf]
  %v43 = vld [vmem:[%s1 + $0x3c] sm:$0xf]
  %v57 = vunpack.c.l.b16 %v15
  %v58 = vunpack.c.l.b16 %v16
  %v59 = vunpack.c.l.b16 %v17
  %v60 = vunpack.c.l.b16 %v18
  %v61 = vunpack.c.l.b16 %v19
  %v62 = vunpack.c.l.b16 %v20
  %v63 = vunpack.c.l.b16 %v21
  %v64 = vunpack.c.l.b16 %v22
  %v65 = vunpack.c.l.b16 %v23
  %v66 = vunpack.c.l.b16 %v24
  %v67 = vunpack.c.l.b16 %v25
  %v68 = vunpack.c.l.b16 %v26
  %v69 = vunpack.c.l.b16 %v27
  %v70 = vpack.c.b16 %v58, %v57
  %v71 = vpack.c.b16 %v60, %v59
  %v72 = vpack.c.b16 %v62, %v61
  %v73 = vpack.c.b16 %v64, %v63
  %v74 = vpack.c.b16 %v66, %v65
  %v75 = vpack.c.b16 %v68, %v67
  %v76 = vpack.c.b16 %v69, %v69
  %v100 = vunpack.c.l.b16 %v28
  %v101 = vunpack.c.l.b16 %v29
  %v102 = vunpack.c.l.b16 %v30
  %v103 = vunpack.c.l.b16 %v31
  %v104 = vunpack.c.l.b16 %v32
  %v105 = vunpack.c.l.b16 %v33
  %v106 = vunpack.c.l.b16 %v34
  %v107 = vunpack.c.l.b16 %v35
  %v108 = vunpack.c.l.b16 %v36
  %v109 = vunpack.c.l.b16 %v37
  %v110 = vunpack.c.l.b16 %v38
  %v111 = vunpack.c.l.b16 %v39
  %v112 = vunpack.c.l.b16 %v40
  %v113 = vunpack.c.l.b16 %v41
  %v114 = vunpack.c.l.b16 %v42
  %v115 = vunpack.c.l.b16 %v43
  %v116 = vpack.c.b16 %v101, %v100
  %v117 = vpack.c.b16 %v103, %v102
  %v118 = vpack.c.b16 %v105, %v104
  %v119 = vpack.c.b16 %v107, %v106
  %v120 = vpack.c.b16 %v109, %v108
  %v121 = vpack.c.b16 %v111, %v110
  %v122 = vpack.c.b16 %v113, %v112
  %v123 = vpack.c.b16 %v115, %v114
  %132 = vmatprep.subr.bf16.mxu0 0
  %133 = vmatpush1.bf16.msra.mxu0 %v123
  %134 = vmatprep.subr.bf16.mxu0 0
  %135 = vmatpush1.bf16.msra.mxu0 %v122
  %136 = vmatprep.subr.bf16.mxu0 0
  %137 = vmatpush1.bf16.msra.mxu0 %v121
  %138 = vmatprep.subr.bf16.mxu0 0
  %139 = vmatpush1.bf16.msra.mxu0 %v120
  %140 = vmatprep.subr.bf16.mxu0 0
  %141 = vmatpush1.bf16.msra.mxu0 %v119
  %142 = vmatprep.subr.bf16.mxu0 0
  %143 = vmatpush1.bf16.msra.mxu0 %v118
  %144 = vmatprep.subr.bf16.mxu0 0
  %145 = vmatpush1.bf16.msra.mxu0 %v117
  %146 = vmatprep.subr.bf16.mxu0 0
  %147 = vmatpush1.bf16.msra.mxu0 %v116
  %148 = vmatprep.subr.bf16.mxu0 0
  %149 = vmatpush2.bf16.msra.mxu0 0
  %150 = vmatprep.subr.bf16.mxu0 0
  %151 = vmatpush2.bf16.msra.mxu0 0
  %152 = vmatprep.subr.bf16.mxu0 0
  %153 = vmatpush2.bf16.msra.mxu0 0
  %154 = vmatprep.subr.bf16.mxu0 0
  %155 = vmatpush2.bf16.msra.mxu0 0
  %156 = vmatprep.subr.bf16.mxu0 0
  %157 = vmatpush2.bf16.msra.mxu0 0
  %158 = vmatprep.subr.bf16.mxu0 0
  %159 = vmatpush2.bf16.msra.mxu0 0
  %160 = vmatprep.subr.bf16.mxu0 0
  %161 = vmatpush2.bf16.msra.mxu0 0
  %162 = vmatprep.subr.bf16.mxu0 0
  %163 = vmatpush2.bf16.msra.mxu0 0
  %164 = vmatprep.mubr.bf16.mxu0 0
  %165 = vmatmul.mubr.bf16.gmra.mxu0 %v70
  %v166 = vpop.f32.mrf.mxu0
  %v167 = vadd.f32 0.0, %v166
  %v168 = vpop.f32.mrf.mxu0
  %v169 = vpop.f32.mrf.mxu0
  %v170 = vadd.f32 0.0, %v169
  %v171 = vpop.f32.mrf.mxu0
  %172 = vmatprep.mubr.bf16.mxu0 0
  %173 = vmatmul.mubr.bf16.gmra.mxu0 %v71
  %v174 = vpop.f32.mrf.mxu0
  %v175 = vadd.f32 0.0, %v174
  %v176 = vpop.f32.mrf.mxu0
  %v177 = vpop.f32.mrf.mxu0
  %v178 = vadd.f32 0.0, %v177
  %v179 = vpop.f32.mrf.mxu0
  %180 = vmatprep.mubr.bf16.mxu0 0
  %181 = vmatmul.mubr.bf16.gmra.mxu0 %v72
  %v182 = vpop.f32.mrf.mxu0
  %v183 = vadd.f32 0.0, %v182
  %v184 = vpop.f32.mrf.mxu0
  %v185 = vpop.f32.mrf.mxu0
  %v186 = vadd.f32 0.0, %v185
  %v187 = vpop.f32.mrf.mxu0
  %188 = vmatprep.mubr.bf16.mxu0 0
  %189 = vmatmul.mubr.bf16.gmra.mxu0 %v73
  %v190 = vpop.f32.mrf.mxu0
  %v191 = vadd.f32 0.0, %v190
  %v192 = vpop.f32.mrf.mxu0
  %v193 = vpop.f32.mrf.mxu0
  %v194 = vadd.f32 0.0, %v193
  %v195 = vpop.f32.mrf.mxu0
  %196 = vmatprep.mubr.bf16.mxu0 0
  %197 = vmatmul.mubr.bf16.gmra.mxu0 %v74
  %v198 = vpop.f32.mrf.mxu0
  %v199 = vadd.f32 0.0, %v198
  %v200 = vpop.f32.mrf.mxu0
  %v201 = vpop.f32.mrf.mxu0
  %v202 = vadd.f32 0.0, %v201
  %v203 = vpop.f32.mrf.mxu0
  %204 = vmatprep.mubr.bf16.mxu0 0
  %205 = vmatmul.mubr.bf16.gmra.mxu0 %v75
  %v206 = vpop.f32.mrf.mxu0
  %v207 = vadd.f32 0.0, %v206
  %v208 = vpop.f32.mrf.mxu0
  %v209 = vpop.f32.mrf.mxu0
  %v210 = vadd.f32 0.0, %v209
  %v211 = vpop.f32.mrf.mxu0
  %212 = vmatprep.mubr.bf16.mxu0 0
  %213 = vmatmul.mubr.bf16.gmra.mxu0 %v76
  %v214 = vpop.f32.mrf.mxu0
  %v215 = vadd.f32 0.0, %v214
  %v216 = vpop.f32.mrf.mxu0
  %v217 = vpop.f32.mrf.mxu0
  %v218 = vpop.f32.mrf.mxu0
  %219 = vdwg.mxu0
  %220 = vst [vmem:[%s2] sm:$0xff] %v167
  %221 = vst [vmem:[%s2 + $0x8] sm:$0xff] %v170
  %222 = vst [vmem:[%s2 + $0x10] sm:$0xff] %v175
  %223 = vst [vmem:[%s2 + $0x18] sm:$0xff] %v178
  %224 = vst [vmem:[%s2 + $0x20] sm:$0xff] %v183
  %225 = vst [vmem:[%s2 + $0x28] sm:$0xff] %v186
  %226 = vst [vmem:[%s2 + $0x30] sm:$0xff] %v191
  %227 = vst [vmem:[%s2 + $0x38] sm:$0xff] %v194
  %228 = vst [vmem:[%s2 + $0x40] sm:$0xff] %v199
  %229 = vst [vmem:[%s2 + $0x48] sm:$0xff] %v202
  %230 = vst [vmem:[%s2 + $0x50] sm:$0xff] %v207
  %231 = vst [vmem:[%s2 + $0x58] sm:$0xff] %v210
  %232 = vst [vmem:[%s2 + $0x60] sm:$0xff] %v215
  %p233 = scmp.eq.s32.totalorder 0, 0
  // Predicated region
  $region10: #{_lambda_.2} parent=0 // pred_check
    %p234 = pneg %p233
  $region11: #{_lambda_.2} parent=0 // pred_check_branch
    %236 = sbr.rel (%p234) target = $region13
  $region12: #{_lambda_.2} parent=0 // pred_region
    %237 = vst [vmem:[%s3] sm:$0x1] 0.0
    %238 = vst [vmem:[%s4] sm:$0x1] 0.0
  $region13: #{_lambda_.2} parent=0 // pred_fallthru
    _
  %v239 = vld [vmem:[%s3] sm:$0x1]
  %v240 = vadd.f32 %v167, %v170
  %v241 = vadd.f32 %v240, %v175
  %v242 = vadd.f32 %v241, %v178
  %v243 = vadd.f32 %v242, %v183
  %v244 = vadd.f32 %v243, %v186
  %v245 = vadd.f32 %v244, %v191
  %v246 = vadd.f32 %v245, %v194
  %v247 = vadd.f32 %v246, %v199
  %v248 = vadd.f32 %v247, %v202
  %v249 = vadd.f32 %v248, %v207
  %v250 = vadd.f32 %v249, %v210
  %v251 = vadd.f32 %v250, %v215
  %v252 = vrot.slane %v251, 4
  %v253 = vadd.f32 %v251, %v252
  %v254 = vrot.slane %v253, 2
  %v255 = vadd.f32 %v253, %v254
  %v256 = vrot.slane %v255, 1
  %v257 = vadd.f32 %v255, %v256
  %v258 = vadd.f32 %v239, %v257
  %259 = vst [vmem:[%s3] sm:$0x1] %v258
  %v260 = vld [vmem:[%s4] sm:$0x1]
  %v261 = vmul.f32 %v167, %v167
  %v262 = vmul.f32 %v170, %v170
  %v263 = vmul.f32 %v175, %v175
  %v264 = vmul.f32 %v178, %v178
  %v265 = vmul.f32 %v183, %v183
  %v266 = vmul.f32 %v186, %v186
  %v267 = vmul.f32 %v191, %v191
  %v268 = vmul.f32 %v194, %v194
  %v269 = vmul.f32 %v199, %v199
  %v270 = vmul.f32 %v202, %v202
  %v271 = vmul.f32 %v207, %v207
  %v272 = vmul.f32 %v210, %v210
  %v273 = vmul.f32 %v215, %v215
  %v274 = vadd.f32 %v261, %v262
  %v275 = vadd.f32 %v274, %v263
  %v276 = vadd.f32 %v275, %v264
  %v277 = vadd.f32 %v276, %v265
  %v278 = vadd.f32 %v277, %v266
  %v279 = vadd.f32 %v278, %v267
  %v280 = vadd.f32 %v279, %v268
  %v281 = vadd.f32 %v280, %v269
  %v282 = vadd.f32 %v281, %v270
  %v283 = vadd.f32 %v282, %v271
  %v284 = vadd.f32 %v283, %v272
  %v285 = vadd.f32 %v284, %v273
  %v286 = vrot.slane %v285, 4
  %v287 = vadd.f32 %v285, %v286
  %v288 = vrot.slane %v287, 2
  %v289 = vadd.f32 %v287, %v288
  %v290 = vrot.slane %v289, 1
  %v291 = vadd.f32 %v289, %v290
  %v292 = vadd.f32 %v260, %v291
  %293 = vst [vmem:[%s4] sm:$0x1] %v292
  // Predicated region
  $region14: #{_lambda_.2} parent=0 // pred_check
    _
  $region15: #{_lambda_.2} parent=0 // pred_check_branch
    %295 = sbr.rel (0) target = $region17
  $region16: #{_lambda_.2} parent=0 // pred_region
    _
  $region17: #{_lambda_.2} parent=0 // pred_fallthru
    _
  // Predicated region
  $region18: #{_lambda_.2} parent=0 // pred_check
    _
  $region19: #{_lambda_.2} parent=0 // pred_check_branch
    %297 = sbr.rel (0) target = $region21
  $region20: #{_lambda_.2} parent=0 // pred_region
    _
  $region21: #{_lambda_.2} parent=0 // pred_fallthru
    _
  // Predicated region
  $region22: #{_lambda_.2} parent=0 // pred_check
    _
  $region23: #{_lambda_.2} parent=0 // pred_check_branch
    %299 = sbr.rel (0) target = $region25
  $region24: #{_lambda_.2} parent=0 // pred_region
    _
  $region25: #{_lambda_.2} parent=0 // pred_fallthru
    _
  // Predicated region
  $region26: #{_lambda_.2} parent=0 // pred_check
    _
  $region27: #{_lambda_.2} parent=0 // pred_check_branch
    %301 = sbr.rel (0) target = $region29
  $region28: #{_lambda_.2} parent=0 // pred_region
    _
  $region29: #{_lambda_.2} parent=0 // pred_fallthru
    _
  // Predicated region
  $region30: #{_lambda_.2} parent=0 // pred_check
    _
  $region31: #{_lambda_.2} parent=0 // pred_check_branch
    %303 = sbr.rel (0) target = $region33
  $region32: #{_lambda_.2} parent=0 // pred_region
    _
  $region33: #{_lambda_.2} parent=0 // pred_fallthru
    _
  // Predicated region
  $region34: #{_lambda_.2} parent=0 // pred_check
    _
  $region35: #{_lambda_.2} parent=0 // pred_check_branch
    %305 = sbr.rel (0) target = $region37
  $region36: #{_lambda_.2} parent=0 // pred_region
    _
  $region37: #{_lambda_.2} parent=0 // pred_fallthru
    _

</llo_original>
